<compile_context>
chip_gen: v5e
topology: v5e:2x2
jax: 0.10.0
libtpu: 0.0.40
codegen_flags: <defaults>
</compile_context>

<pallas_src>
import functools
import math

import jax
import jax.numpy as jnp
from jax.experimental import pallas as pl
from jax.experimental.pallas import tpu as pltpu


def _round_up(n: int, m: int) -> int:
    return ((n + m - 1) // m) * m


def gru_cell_kernel(x_ref, h_ref, wx_ref, wh_ref, bx_ref, bh_ref, out_ref, *, hp):
    """One batch tile of the GRU cell.

    x_ref : (TB, Ip)      input tile (compute dtype, f32 or bf16)
    h_ref : (TB, Hp)      hidden tile
    wx_ref: (Ip, 3*Hp)    packed input->gates weights, gate order [r | i | n]
    wh_ref: (Hp, 3*Hp)    packed hidden->gates weights
    bx_ref/bh_ref: (1, 3*Hp)  f32 biases
    out_ref: (TB, Hp)
    """
    x = x_ref[...]
    h = h_ref[...]

    # Two MXU matmuls with lane-dense N = 3*Hp, f32 accumulation.
    gx = jnp.dot(x, wx_ref[...], preferred_element_type=jnp.float32) + bx_ref[...]
    gh = jnp.dot(h, wh_ref[...], preferred_element_type=jnp.float32) + bh_ref[...]

    # Static, lane-aligned per-gate slices (hp is a multiple of 128).
    i_r, i_i, i_n = gx[:, :hp], gx[:, hp:2 * hp], gx[:, 2 * hp:]
    h_r, h_i, h_n = gh[:, :hp], gh[:, hp:2 * hp], gh[:, 2 * hp:]

    resetgate = jax.nn.sigmoid(i_r + h_r)        # EUP (free under MXU-bound)
    inputgate = jax.nn.sigmoid(i_i + h_i)
    # n-gate hidden projection kept separate: it is scaled by resetgate first.
    newgate = jnp.tanh(i_n + resetgate * h_n)

    h_f32 = h.astype(jnp.float32)
    hy = newgate + inputgate * (h_f32 - newgate)
    out_ref[...] = hy.astype(out_ref.dtype)


def pack_gru_params(w_x2h, b_x2h, w_h2h, b_h2h, *, compute_dtype=None, lane=128):
    """One-time weight prep (hoisted out of the per-step call).

    PyTorch nn.Linear layout (3H, in) -> lane-dense packed (in_p, 3*H_p) with
    gate order [r | i | n] along the last axis, zero-padded so in_p and H_p
    are multiples of `lane`.
    """
    three_h, input_size = w_x2h.shape
    hidden_size = three_h // 3
    hp = _round_up(hidden_size, lane)
    ip = _round_up(input_size, lane)
    if compute_dtype is None:
        compute_dtype = w_x2h.dtype

    wx = w_x2h.reshape(3, hidden_size, input_size)
    wx = jnp.pad(wx, ((0, 0), (0, hp - hidden_size), (0, ip - input_size)))
    wx = jnp.transpose(wx, (2, 0, 1)).reshape(ip, 3 * hp)

    wh = w_h2h.reshape(3, hidden_size, hidden_size)
    wh = jnp.pad(wh, ((0, 0), (0, hp - hidden_size), (0, hp - hidden_size)))
    wh = jnp.transpose(wh, (2, 0, 1)).reshape(hp, 3 * hp)

    bx = jnp.pad(b_x2h.reshape(3, hidden_size),
                 ((0, 0), (0, hp - hidden_size))).reshape(1, 3 * hp)
    bh = jnp.pad(b_h2h.reshape(3, hidden_size),
                 ((0, 0), (0, hp - hidden_size))).reshape(1, 3 * hp)

    return {
        "wx": wx.astype(compute_dtype),
        "wh": wh.astype(compute_dtype),
        "bx": bx.astype(jnp.float32),   # biases stay f32 (added post-matmul)
        "bh": bh.astype(jnp.float32),
        "input_size": input_size,
        "hidden_size": hidden_size,
        "ip": ip,
        "hp": hp,
        "compute_dtype": compute_dtype,
    }


def gru_cell(x, hidden, params, *, block_b=128):
    """Pallas GRUCell forward using pre-packed params from pack_gru_params."""
    B, I = x.shape
    H = hidden.shape[1]
    assert I == params["input_size"] and H == params["hidden_size"]
    ip, hp = params["ip"], params["hp"]
    compute_dtype = params["compute_dtype"]

    # Batch tiling: sublane-aligned tile, batch zero-padded to a tile multiple.
    tb = min(block_b, _round_up(B, 8))
    bp = _round_up(B, tb)

    x_p = jnp.pad(x.astype(compute_dtype), ((0, bp - B), (0, ip - I)))
    h_p = jnp.pad(hidden.astype(compute_dtype), ((0, bp - B), (0, hp - H)))

    # VMEM budget: resident weights + biases + double-buffered activation tiles
    # + f32 gate intermediates.  Capped at 64 MiB (v7x physical VMEM).
    itemsize = jnp.dtype(compute_dtype).itemsize
    w_bytes = (ip + hp) * 3 * hp * itemsize + 2 * 3 * hp * 4
    act_bytes = tb * (ip + 2 * hp) * itemsize + tb * hp * jnp.dtype(hidden.dtype).itemsize
    gate_bytes = 2 * tb * 3 * hp * 4
    needed = w_bytes + 2 * act_bytes + gate_bytes
    # TODO(synk): for very large I/H (weights > ~48 MiB) tile the contraction
    # dim with an f32 accumulator scratch instead of holding full-width
    # weights resident in VMEM.
    vmem_limit = int(min(max(2 * needed, 32 * 1024 * 1024), 64 * 1024 * 1024))

    kernel = functools.partial(gru_cell_kernel, hp=hp)

    out = pl.pallas_call(
        kernel,
        out_shape=jax.ShapeDtypeStruct((bp, hp), hidden.dtype),
        grid_spec=pltpu.PrefetchScalarGridSpec(
            num_scalar_prefetch=0,
            grid=(bp // tb,),
            in_specs=[
                pl.BlockSpec((tb, ip), lambda i: (i, 0)),        # x tile
                pl.BlockSpec((tb, hp), lambda i: (i, 0)),        # h tile
                pl.BlockSpec((ip, 3 * hp), lambda i: (0, 0)),    # Wx (VMEM resident)
                pl.BlockSpec((hp, 3 * hp), lambda i: (0, 0)),    # Wh (VMEM resident)
                pl.BlockSpec((1, 3 * hp), lambda i: (0, 0)),     # bx
                pl.BlockSpec((1, 3 * hp), lambda i: (0, 0)),     # bh
            ],
            out_specs=pl.BlockSpec((tb, hp), lambda i: (i, 0)),
        ),
        compiler_params=pltpu.CompilerParams(
            dimension_semantics=("parallel",),   # batch axis -> 2 TCs on v7x
            vmem_limit_bytes=vmem_limit,
        ),
    )(x_p, h_p, params["wx"], params["wh"], params["bx"], params["bh"])

    return out[:B, :H]


def gru_cell_ref(x, hidden, w_x2h, b_x2h, w_h2h, b_h2h):
    """Pure-JAX reference mirroring the PyTorch forward exactly."""
    gate_x = x @ w_x2h.T + b_x2h
    gate_h = hidden @ w_h2h.T + b_h2h
    H = hidden.shape[1]
    i_r, i_i, i_n = gate_x[:, :H], gate_x[:, H:2 * H], gate_x[:, 2 * H:]
    h_r, h_i, h_n = gate_h[:, :H], gate_h[:, H:2 * H], gate_h[:, 2 * H:]
    resetgate = jax.nn.sigmoid(i_r + h_r)
    inputgate = jax.nn.sigmoid(i_i + h_i)
    newgate = jnp.tanh(i_n + resetgate * h_n)
    return newgate + inputgate * (hidden - newgate)


if __name__ == "__main__":
    batch = 8
    input_size = 16
    hidden_size = 32

    key = jax.random.PRNGKey(0)
    k_x, k_h, k_wx, k_bx, k_wh, k_bh = jax.random.split(key, 6)

    # Deterministic init matching reset_parameters(): uniform(-std, std),
    # std = 1/sqrt(hidden_size).
    std = 1.0 / math.sqrt(hidden_size)
    w_x2h = jax.random.uniform(k_wx, (3 * hidden_size, input_size),
                               jnp.float32, minval=-std, maxval=std)
    b_x2h = jax.random.uniform(k_bx, (3 * hidden_size,),
                               jnp.float32, minval=-std, maxval=std)
    w_h2h = jax.random.uniform(k_wh, (3 * hidden_size, hidden_size),
                               jnp.float32, minval=-std, maxval=std)
    b_h2h = jax.random.uniform(k_bh, (3 * hidden_size,),
                               jnp.float32, minval=-std, maxval=std)

    x = jax.random.normal(k_x, (batch, input_size), jnp.float32)
    hidden = jax.random.normal(k_h, (batch, hidden_size), jnp.float32)

    ref = gru_cell_ref(x, hidden, w_x2h, b_x2h, w_h2h, b_h2h)

    # f32 path: exact parity with the PyTorch module.
    params_f32 = pack_gru_params(w_x2h, b_x2h, w_h2h, b_h2h,
                                 compute_dtype=jnp.float32)
    out_f32 = jax.block_until_ready(gru_cell(x, hidden, params_f32))
    assert out_f32.shape == (batch, hidden_size)
    assert jnp.allclose(out_f32, ref, atol=1e-5, rtol=1e-5)

    # bf16 weights/activations path (f32 accumulation + f32 gate math) —
    # the bandwidth-optimized configuration recommended for v5e/v6e/v7x.
    params_bf16 = pack_gru_params(w_x2h, b_x2h, w_h2h, b_h2h,
                                  compute_dtype=jnp.bfloat16)
    out_bf16 = jax.block_until_ready(gru_cell(x, hidden, params_bf16))
    assert out_bf16.shape == (batch, hidden_size)
    assert jnp.allclose(out_bf16, ref, atol=5e-2, rtol=5e-2)

    print("KERNEL_OK")
</pallas_src>

<mosaic_0001>
module attributes {stable_mosaic.version = 11 : i64} {
  func.func @gru_cell_kernel(%arg0: i32, %arg1: memref<8x128xf32, #tpu.memory_space<vmem>>, %arg2: memref<8x128xf32, #tpu.memory_space<vmem>>, %arg3: memref<128x384xf32, #tpu.memory_space<vmem>>, %arg4: memref<128x384xf32, #tpu.memory_space<vmem>>, %arg5: memref<1x384xf32, #tpu.memory_space<vmem>>, %arg6: memref<1x384xf32, #tpu.memory_space<vmem>>, %arg7: memref<8x128xf32, #tpu.memory_space<vmem>>) attributes {dimension_semantics = [#tpu.dimension_semantics<parallel>], iteration_bounds = array<i64: 1>, scalar_prefetch = 0 : i64, scratch_operands = 0 : i64, tpu.core_type = #tpu.core_type<tc>, window_params = [{transform_indices = @transform_0, window_bounds = array<i64: 8, 128>}, {transform_indices = @transform_1, window_bounds = array<i64: 8, 128>}, {pipeline_mode = #tpu.pipeline_mode<synchronous>, transform_indices = @transform_2, window_bounds = array<i64: 128, 384>}, {pipeline_mode = #tpu.pipeline_mode<synchronous>, transform_indices = @transform_3, window_bounds = array<i64: 128, 384>}, {pipeline_mode = #tpu.pipeline_mode<synchronous>, transform_indices = @transform_4, window_bounds = array<i64: 1, 384>}, {pipeline_mode = #tpu.pipeline_mode<synchronous>, transform_indices = @transform_5, window_bounds = array<i64: 1, 384>}, {transform_indices = @transform_6, window_bounds = array<i64: 8, 128>}]} {
    %c0 = arith.constant 0 : index
    %c0_0 = arith.constant 0 : index
    %0 = vector.load %arg1[%c0, %c0_0] : memref<8x128xf32, #tpu.memory_space<vmem>>, vector<8x128xf32>
    %c0_1 = arith.constant 0 : index
    %c0_2 = arith.constant 0 : index
    %1 = vector.load %arg2[%c0_1, %c0_2] : memref<8x128xf32, #tpu.memory_space<vmem>>, vector<8x128xf32>
    %c0_3 = arith.constant 0 : index
    %c0_4 = arith.constant 0 : index
    %2 = vector.load %arg3[%c0_3, %c0_4] : memref<128x384xf32, #tpu.memory_space<vmem>>, vector<128x384xf32>
    %cst = arith.constant dense<0.000000e+00> : vector<8x384xf32>
    %3 = tpu.matmul %0, %2, %cst {dimension_numbers = #tpu.dot_dimension_numbers<[1], [0], [0], [1], [0, 0, 1, 1], [], []>} : vector<8x128xf32>, vector<128x384xf32>, vector<8x384xf32> -> vector<8x384xf32>
    %c0_5 = arith.constant 0 : index
    %c0_6 = arith.constant 0 : index
    %4 = vector.load %arg5[%c0_5, %c0_6] : memref<1x384xf32, #tpu.memory_space<vmem>>, vector<1x384xf32>
    %5 = vector.broadcast %4 : vector<1x384xf32> to vector<8x384xf32>
    %6 = arith.addf %3, %5 : vector<8x384xf32>
    %c0_7 = arith.constant 0 : index
    %c0_8 = arith.constant 0 : index
    %7 = vector.load %arg4[%c0_7, %c0_8] : memref<128x384xf32, #tpu.memory_space<vmem>>, vector<128x384xf32>
    %cst_9 = arith.constant dense<0.000000e+00> : vector<8x384xf32>
    %8 = tpu.matmul %1, %7, %cst_9 {dimension_numbers = #tpu.dot_dimension_numbers<[1], [0], [0], [1], [0, 0, 1, 1], [], []>} : vector<8x128xf32>, vector<128x384xf32>, vector<8x384xf32> -> vector<8x384xf32>
    %c0_10 = arith.constant 0 : index
    %c0_11 = arith.constant 0 : index
    %9 = vector.load %arg6[%c0_10, %c0_11] : memref<1x384xf32, #tpu.memory_space<vmem>>, vector<1x384xf32>
    %10 = vector.broadcast %9 : vector<1x384xf32> to vector<8x384xf32>
    %11 = arith.addf %8, %10 : vector<8x384xf32>
    %12 = vector.extract_strided_slice %6 {offsets = [0, 0], sizes = [8, 128], strides = [1, 1]} : vector<8x384xf32> to vector<8x128xf32>
    %13 = vector.extract_strided_slice %6 {offsets = [0, 128], sizes = [8, 128], strides = [1, 1]} : vector<8x384xf32> to vector<8x128xf32>
    %14 = vector.extract_strided_slice %6 {offsets = [0, 256], sizes = [8, 128], strides = [1, 1]} : vector<8x384xf32> to vector<8x128xf32>
    %15 = vector.extract_strided_slice %11 {offsets = [0, 0], sizes = [8, 128], strides = [1, 1]} : vector<8x384xf32> to vector<8x128xf32>
    %16 = vector.extract_strided_slice %11 {offsets = [0, 128], sizes = [8, 128], strides = [1, 1]} : vector<8x384xf32> to vector<8x128xf32>
    %17 = vector.extract_strided_slice %11 {offsets = [0, 256], sizes = [8, 128], strides = [1, 1]} : vector<8x384xf32> to vector<8x128xf32>
    %18 = arith.addf %12, %15 : vector<8x128xf32>
    %19 = arith.negf %18 : vector<8x128xf32>
    %20 = math.exp %19 : vector<8x128xf32>
    %cst_12 = arith.constant 1.000000e+00 : f32
    %21 = vector.broadcast %cst_12 : f32 to vector<8x128xf32>
    %22 = arith.addf %21, %20 : vector<8x128xf32>
    %23 = arith.divf %21, %22 : vector<8x128xf32>
    %24 = arith.addf %13, %16 : vector<8x128xf32>
    %25 = arith.negf %24 : vector<8x128xf32>
    %26 = math.exp %25 : vector<8x128xf32>
    %cst_13 = arith.constant 1.000000e+00 : f32
    %27 = vector.broadcast %cst_13 : f32 to vector<8x128xf32>
    %28 = arith.addf %27, %26 : vector<8x128xf32>
    %29 = arith.divf %27, %28 : vector<8x128xf32>
    %30 = arith.mulf %23, %17 : vector<8x128xf32>
    %31 = arith.addf %14, %30 : vector<8x128xf32>
    %32 = math.tanh %31 : vector<8x128xf32>
    %33 = arith.subf %1, %32 : vector<8x128xf32>
    %34 = arith.mulf %29, %33 : vector<8x128xf32>
    %35 = arith.addf %32, %34 : vector<8x128xf32>
    %c0_14 = arith.constant 0 : index
    %c0_15 = arith.constant 0 : index
    %36 = vector.load %arg7[%c0_14, %c0_15] : memref<8x128xf32, #tpu.memory_space<vmem>>, vector<8x128xf32>
    tpu.vector_store %arg7[%c0_14, %c0_15], %35 {strides = array<i32>} : memref<8x128xf32, #tpu.memory_space<vmem>>, vector<8x128xf32>,
    return
  }
  func.func @transform_0(%arg0: i32) -> (i32, i32) {
    %c0_i32 = arith.constant 0 : i32
    %c0_i32_0 = arith.constant 0 : i32
    return %arg0, %c0_i32 : i32, i32
  }
  func.func @transform_1(%arg0: i32) -> (i32, i32) {
    %c0_i32 = arith.constant 0 : i32
    %c0_i32_0 = arith.constant 0 : i32
    return %arg0, %c0_i32 : i32, i32
  }
  func.func @transform_2(%arg0: i32) -> (i32, i32) {
    %c0_i32 = arith.constant 0 : i32
    %c0_i32_0 = arith.constant 0 : i32
    %c0_i32_1 = arith.constant 0 : i32
    return %c0_i32, %c0_i32_0 : i32, i32
  }
  func.func @transform_3(%arg0: i32) -> (i32, i32) {
    %c0_i32 = arith.constant 0 : i32
    %c0_i32_0 = arith.constant 0 : i32
    %c0_i32_1 = arith.constant 0 : i32
    return %c0_i32, %c0_i32_0 : i32, i32
  }
  func.func @transform_4(%arg0: i32) -> (i32, i32) {
    %c0_i32 = arith.constant 0 : i32
    %c0_i32_0 = arith.constant 0 : i32
    %c0_i32_1 = arith.constant 0 : i32
    return %c0_i32, %c0_i32_0 : i32, i32
  }
  func.func @transform_5(%arg0: i32) -> (i32, i32) {
    %c0_i32 = arith.constant 0 : i32
    %c0_i32_0 = arith.constant 0 : i32
    %c0_i32_1 = arith.constant 0 : i32
    return %c0_i32, %c0_i32_0 : i32, i32
  }
  func.func @transform_6(%arg0: i32) -> (i32, i32) {
    %c0_i32 = arith.constant 0 : i32
    %c0_i32_0 = arith.constant 0 : i32
    return %arg0, %c0_i32 : i32, i32
  }
}

</mosaic_0001>

<llo_original>
// kernel: tpu_custom_call.1
$region0: #{tpu_custom_call.1}
  #allocation0 [shape = 'u32[]', space=smem, size = 0x4, offset = 0x4, fixed_abs, tag = 'smem constant byte address 0x4 - core index']
  #allocation1 [shape = 'u32[72,128]{1,0:T(1,128)}', space=vmem, size = 0x9000, scoped, tag = 'internal scratch']
  %s0 = inlined_call_operand.hbm [shape: f32[8,128], index: 0, kind: input, shape index: {}]
  %s1 = inlined_call_operand.hbm [shape: f32[8,128], index: 1, kind: input, shape index: {}]
  %s2 = inlined_call_operand.hbm [shape: f32[128,384], index: 2, kind: input, shape index: {}]
  %s3 = inlined_call_operand.hbm [shape: f32[128,384], index: 3, kind: input, shape index: {}]
  %s4 = inlined_call_operand.vmem [shape: f32[1,384], index: 4, kind: input, shape index: {}]
  %s5 = inlined_call_operand.hbm [shape: f32[1,384], index: 5, kind: input, shape index: {}]
  %s6 = inlined_call_operand.hbm [shape: f32[8,128], index: 6, kind: output, shape index: {}]
  %s7 = sld [smem:[#allocation0]]
  $region54: #{tpu_custom_call.1} parent=0
    _
  %s9 = ssub.s32 1, %s7
  %s10 = scalar_select 0, %s9, %s7
  $region1: #{tpu_custom_call.1} parent=0
    #allocation2 [shape = 'u8[4096]{0}', space=vmem, size = 0x1000, scoped, tag = 'input window, operand 0, single buffered']
    #allocation3 [shape = 's32[1]{0}', space=sflag, size = 0x4, scoped, tag = 'scoped memory for tpu_custom_call.1']
    #allocation4 [shape = 's32[1]{0}', space=sflag, size = 0x4, scoped, tag = 'scoped memory for tpu_custom_call.1']
    #allocation5 [shape = 'u8[4096]{0}', space=vmem, size = 0x1000, scoped, tag = 'input window, operand 1, single buffered']
    #allocation6 [shape = 's32[1]{0}', space=sflag, size = 0x4, scoped, tag = 'scoped memory for tpu_custom_call.1']
    #allocation7 [shape = 'u8[196608]{0}', space=vmem, size = 0x30000, scoped, tag = 'input window, operand 2, single buffered']
    #allocation8 [shape = 'u8[196608]{0}', space=vmem, size = 0x30000, scoped, tag = 'input window, operand 3, single buffered']
    #allocation9 [shape = 's32[1]{0}', space=sflag, size = 0x4, scoped, tag = 'scoped memory for tpu_custom_call.1']
    #allocation10 [shape = 'u8[1536]{0}', space=vmem, size = 0x800, scoped, tag = 'input window, operand 5, single buffered']
    #allocation11 [shape = 'u8[4096]{0}', space=vmem, size = 0x1000, scoped, tag = 'output window, operand 0, single buffered']
    %11 = vsyncpa [#allocation3], 0
    %12 = vsyncpa [#allocation6], 0
    %13 = vsyncpa [#allocation9], 0
    %14 = vsyncpa [#allocation4], 0
    // Predicated region
    $region2: #{tpu_custom_call.1} parent=1 // pred_check
      _
    $region3: #{tpu_custom_call.1} parent=1 // pred_check_branch
      %16 = sbr.rel (0) target = $region5
    $region4: #{tpu_custom_call.1} parent=1 // pred_region
      %18 = vsyncadd [#allocation3], 0
      %s20 = sshll.u32 %s0, 4
      %s21 = int_to_ptr.hbm [resolvable:$true] %s20
      %s22 = sshll.u32 [#allocation2], 4
      %s23 = int_to_ptr.vmem [resolvable:$true] %s22
      %25 = dma.hbm_to_vmem [thread:$0]  %s21, 128, %s23, [#allocation3]
    $region5: #{tpu_custom_call.1} parent=1 // pred_fallthru
      _
    // Predicated region
    $region6: #{tpu_custom_call.1} parent=1 // pred_check
      _
    $region7: #{tpu_custom_call.1} parent=1 // pred_check_branch
      %27 = sbr.rel (0) target = $region9
    $region8: #{tpu_custom_call.1} parent=1 // pred_region
      %29 = vsyncadd [#allocation6], 0
      %s31 = sshll.u32 %s1, 4
      %s32 = int_to_ptr.hbm [resolvable:$true] %s31
      %s33 = sshll.u32 [#allocation5], 4
      %s34 = int_to_ptr.vmem [resolvable:$true] %s33
      %36 = dma.hbm_to_vmem [thread:$0]  %s32, 128, %s34, [#allocation6]
    $region9: #{tpu_custom_call.1} parent=1 // pred_fallthru
      _
    // Predicated region
    $region10: #{tpu_custom_call.1} parent=1 // pred_check
      _
    $region11: #{tpu_custom_call.1} parent=1 // pred_check_branch
      %38 = sbr.rel (0) target = $region13
    $region12: #{tpu_custom_call.1} parent=1 // pred_region
      %40 = vsyncadd [#allocation6], 0
      %s41 = sshll.u32 %s2, 4
      %s42 = int_to_ptr.hbm [resolvable:$true] %s41
      %s43 = sshll.u32 [#allocation7], 4
      %s44 = int_to_ptr.vmem [resolvable:$true] %s43
      %49 = dma.hbm_to_vmem [thread:$0]  %s42, 6144, %s44, [#allocation6], 384, 384, 24
    $region13: #{tpu_custom_call.1} parent=1 // pred_fallthru
      _
    // Predicated region
    $region14: #{tpu_custom_call.1} parent=1 // pred_check
      _
    $region15: #{tpu_custom_call.1} parent=1 // pred_check_branch
      %51 = sbr.rel (0) target = $region17
    $region16: #{tpu_custom_call.1} parent=1 // pred_region
      %53 = vsyncadd [#allocation9], 0
      %s54 = sshll.u32 %s3, 4
      %s55 = int_to_ptr.hbm [resolvable:$true] %s54
      %s56 = sshll.u32 [#allocation8], 4
      %s57 = int_to_ptr.vmem [resolvable:$true] %s56
      %62 = dma.hbm_to_vmem [thread:$0]  %s55, 6144, %s57, [#allocation9], 384, 384, 24
    $region17: #{tpu_custom_call.1} parent=1 // pred_fallthru
      _
    // Predicated region
    $region18: #{tpu_custom_call.1} parent=1 // pred_check
      _
    $region19: #{tpu_custom_call.1} parent=1 // pred_check_branch
      %64 = sbr.rel (0) target = $region21
    $region20: #{tpu_custom_call.1} parent=1 // pred_region
      _
    $region21: #{tpu_custom_call.1} parent=1 // pred_fallthru
      _
    // Predicated region
    $region22: #{tpu_custom_call.1} parent=1 // pred_check
      _
    $region23: #{tpu_custom_call.1} parent=1 // pred_check_branch
      %66 = sbr.rel (0) target = $region25
    $region24: #{tpu_custom_call.1} parent=1 // pred_region
      %68 = vsyncadd [#allocation9], 0
      %s70 = sshll.u32 %s5, 4
      %s71 = int_to_ptr.hbm [resolvable:$true] %s70
      %s72 = sshll.u32 [#allocation10], 4
      %s73 = int_to_ptr.vmem [resolvable:$true] %s72
      %75 = dma.hbm_to_vmem [thread:$0]  %s71, 48, %s73, [#allocation9]
    $region25: #{tpu_custom_call.1} parent=1 // pred_fallthru
      _
    // Predicated region
    $region26: #{tpu_custom_call.1} parent=1 // pred_check
      _
    $region27: #{tpu_custom_call.1} parent=1 // pred_check_branch
      %77 = sbr.rel (0) target = $region29
    $region28: #{tpu_custom_call.1} parent=1 // pred_region
      %79 = dma.done [#allocation3], 128
    $region29: #{tpu_custom_call.1} parent=1 // pred_fallthru
      _
    // Predicated region
    $region30: #{tpu_custom_call.1} parent=1 // pred_check
      _
    $region31: #{tpu_custom_call.1} parent=1 // pred_check_branch
      %81 = sbr.rel (0) target = $region33
    $region32: #{tpu_custom_call.1} parent=1 // pred_region
      %83 = dma.done [#allocation6], 128
    $region33: #{tpu_custom_call.1} parent=1 // pred_fallthru
      _
    // Predicated region
    $region34: #{tpu_custom_call.1} parent=1 // pred_check
      _
    $region35: #{tpu_custom_call.1} parent=1 // pred_check_branch
      %85 = sbr.rel (0) target = $region37
    $region36: #{tpu_custom_call.1} parent=1 // pred_region
      %87 = dma.done [#allocation6], 6144
    $region37: #{tpu_custom_call.1} parent=1 // pred_fallthru
      _
    // Predicated region
    $region38: #{tpu_custom_call.1} parent=1 // pred_check
      _
    $region39: #{tpu_custom_call.1} parent=1 // pred_check_branch
      %89 = sbr.rel (0) target = $region41
    $region40: #{tpu_custom_call.1} parent=1 // pred_region
      %91 = dma.done [#allocation9], 6144
    $region41: #{tpu_custom_call.1} parent=1 // pred_fallthru
      _
    // Predicated region
    $region42: #{tpu_custom_call.1} parent=1 // pred_check
      _
    $region43: #{tpu_custom_call.1} parent=1 // pred_check_branch
      %93 = sbr.rel (0) target = $region45
    $region44: #{tpu_custom_call.1} parent=1 // pred_region
      %95 = dma.done [#allocation9], 48
    $region45: #{tpu_custom_call.1} parent=1 // pred_fallthru
      _
    %v96 = vld [vmem:[#allocation2] sm:$0xff]
    %v97 = vld [vmem:[#allocation5] sm:$0xff]
    %v98 = vld [vmem:[#allocation7] sm:$0xff]
    %v99 = vld [vmem:[#allocation7 + $0x8] sm:$0xff]
    %v100 = vld [vmem:[#allocation7 + $0x10] sm:$0xff]
    %v101 = vld [vmem:[#allocation7 + $0x18] sm:$0xff]
    %v102 = vld [vmem:[#allocation7 + $0x20] sm:$0xff]
    %v103 = vld [vmem:[#allocation7 + $0x28] sm:$0xff]
    %v104 = vld [vmem:[#allocation7 + $0x30] sm:$0xff]
    %v105 = vld [vmem:[#allocation7 + $0x38] sm:$0xff]
    %v106 = vld [vmem:[#allocation7 + $0x40] sm:$0xff]
    %v107 = vld [vmem:[#allocation7 + $0x48] sm:$0xff]
    %v108 = vld [vmem:[#allocation7 + $0x50] sm:$0xff]
    %v109 = vld [vmem:[#allocation7 + $0x58] sm:$0xff]
    %v110 = vld [vmem:[#allocation7 + $0x60] sm:$0xff]
    %v111 = vld [vmem:[#allocation7 + $0x68] sm:$0xff]
    %v112 = vld [vmem:[#allocation7 + $0x70] sm:$0xff]
    %v113 = vld [vmem:[#allocation7 + $0x78] sm:$0xff]
    %v114 = vld [vmem:[#allocation7 + $0x80] sm:$0xff]
    %v115 = vld [vmem:[#allocation7 + $0x88] sm:$0xff]
    %v116 = vld [vmem:[#allocation7 + $0x90] sm:$0xff]
    %v117 = vld [vmem:[#allocation7 + $0x98] sm:$0xff]
    %v118 = vld [vmem:[#allocation7 + $0xa0] sm:$0xff]
    %v119 = vld [vmem:[#allocation7 + $0xa8] sm:$0xff]
    %v120 = vld [vmem:[#allocation7 + $0xb0] sm:$0xff]
    %v121 = vld [vmem:[#allocation7 + $0xb8] sm:$0xff]
    %v122 = vld [vmem:[#allocation7 + $0xc0] sm:$0xff]
    %v123 = vld [vmem:[#allocation7 + $0xc8] sm:$0xff]
    %v124 = vld [vmem:[#allocation7 + $0xd0] sm:$0xff]
    %v125 = vld [vmem:[#allocation7 + $0xd8] sm:$0xff]
    %v126 = vld [vmem:[#allocation7 + $0xe0] sm:$0xff]
    %v127 = vld [vmem:[#allocation7 + $0xe8] sm:$0xff]
    %v128 = vld [vmem:[#allocation7 + $0xf0] sm:$0xff]
    %v129 = vld [vmem:[#allocation7 + $0xf8] sm:$0xff]
    %v130 = vld [vmem:[#allocation7 + $0x100] sm:$0xff]
    %v131 = vld [vmem:[#allocation7 + $0x108] sm:$0xff]
    %v132 = vld [vmem:[#allocation7 + $0x110] sm:$0xff]
    %v133 = vld [vmem:[#allocation7 + $0x118] sm:$0xff]
    %v134 = vld [vmem:[#allocation7 + $0x120] sm:$0xff]
    %v135 = vld [vmem:[#allocation7 + $0x128] sm:$0xff]
    %v136 = vld [vmem:[#allocation7 + $0x130] sm:$0xff]
    %v137 = vld [vmem:[#allocation7 + $0x138] sm:$0xff]
    %v138 = vld [vmem:[#allocation7 + $0x140] sm:$0xff]
    %v139 = vld [vmem:[#allocation7 + $0x148] sm:$0xff]
    %v140 = vld [vmem:[#allocation7 + $0x150] sm:$0xff]
    %v141 = vld [vmem:[#allocation7 + $0x158] sm:$0xff]
    %v142 = vld [vmem:[#allocation7 + $0x160] sm:$0xff]
    %v143 = vld [vmem:[#allocation7 + $0x168] sm:$0xff]
    %v144 = vld [vmem:[#allocation7 + $0x170] sm:$0xff]
    %v145 = vld [vmem:[#allocation7 + $0x178] sm:$0xff]
    %v146 = vld [vmem:[%s4] sm:$0x7]
    %v148 = vperm.slane %v146, 0
    %v149 = vperm.slane %v146, 1
    %v150 = vperm.slane %v146, 2
    %154 = vmatpush.msra.mxu0 %v143
    %155 = vmatpush.msra.mxu0 %v140
    %156 = vmatpush.msra.mxu0 %v137
    %157 = vmatpush.msra.mxu0 %v134
    %158 = vmatpush.msra.mxu0 %v131
    %159 = vmatpush.msra.mxu0 %v128
    %160 = vmatpush.msra.mxu0 %v125
    %161 = vmatpush.msra.mxu0 %v122
    %162 = vmatpush.msra.mxu0 %v119
    %163 = vmatpush.msra.mxu0 %v116
    %164 = vmatpush.msra.mxu0 %v113
    %165 = vmatpush.msra.mxu0 %v110
    %166 = vmatpush.msra.mxu0 %v107
    %167 = vmatpush.msra.mxu0 %v104
    %168 = vmatpush.msra.mxu0 %v101
    %169 = vmatpush.msra.mxu0 %v98
    %170 = vmatmul.f32.gmra.mxu0 %v96
    %v171 = vpop.f32.mrf.mxu0
    %v172 = vadd.f32 %v148, %v171
    %173 = vdwg.mxu0
    %174 = vmatpush.msra.mxu0 %v144
    %175 = vmatpush.msra.mxu0 %v141
    %176 = vmatpush.msra.mxu0 %v138
    %177 = vmatpush.msra.mxu0 %v135
    %178 = vmatpush.msra.mxu0 %v132
    %179 = vmatpush.msra.mxu0 %v129
    %180 = vmatpush.msra.mxu0 %v126
    %181 = vmatpush.msra.mxu0 %v123
    %182 = vmatpush.msra.mxu0 %v120
    %183 = vmatpush.msra.mxu0 %v117
    %184 = vmatpush.msra.mxu0 %v114
    %185 = vmatpush.msra.mxu0 %v111
    %186 = vmatpush.msra.mxu0 %v108
    %187 = vmatpush.msra.mxu0 %v105
    %188 = vmatpush.msra.mxu0 %v102
    %189 = vmatpush.msra.mxu0 %v99
    %190 = vmatmul.f32.gmra.mxu0 %v96
    %v191 = vpop.f32.mrf.mxu0
    %v192 = vadd.f32 %v149, %v191
    %193 = vdwg.mxu0
    %194 = vmatpush.msra.mxu0 %v145
    %195 = vmatpush.msra.mxu0 %v142
    %196 = vmatpush.msra.mxu0 %v139
    %197 = vmatpush.msra.mxu0 %v136
    %198 = vmatpush.msra.mxu0 %v133
    %199 = vmatpush.msra.mxu0 %v130
    %200 = vmatpush.msra.mxu0 %v127
    %201 = vmatpush.msra.mxu0 %v124
    %202 = vmatpush.msra.mxu0 %v121
    %203 = vmatpush.msra.mxu0 %v118
    %204 = vmatpush.msra.mxu0 %v115
    %205 = vmatpush.msra.mxu0 %v112
    %206 = vmatpush.msra.mxu0 %v109
    %207 = vmatpush.msra.mxu0 %v106
    %208 = vmatpush.msra.mxu0 %v103
    %209 = vmatpush.msra.mxu0 %v100
    %210 = vmatmul.f32.gmra.mxu0 %v96
    %v211 = vpop.f32.mrf.mxu0
    %v212 = vadd.f32 %v150, %v211
    %213 = vdwg.mxu0
    %v214 = vld [vmem:[#allocation8] sm:$0xff]
    %v215 = vld [vmem:[#allocation8 + $0x8] sm:$0xff]
    %v216 = vld [vmem:[#allocation8 + $0x10] sm:$0xff]
    %v217 = vld [vmem:[#allocation8 + $0x18] sm:$0xff]
    %v218 = vld [vmem:[#allocation8 + $0x20] sm:$0xff]
    %v219 = vld [vmem:[#allocation8 + $0x28] sm:$0xff]
    %v220 = vld [vmem:[#allocation8 + $0x30] sm:$0xff]
    %v221 = vld [vmem:[#allocation8 + $0x38] sm:$0xff]
    %v222 = vld [vmem:[#allocation8 + $0x40] sm:$0xff]
    %v223 = vld [vmem:[#allocation8 + $0x48] sm:$0xff]
    %v224 = vld [vmem:[#allocation8 + $0x50] sm:$0xff]
    %v225 = vld [vmem:[#allocation8 + $0x58] sm:$0xff]
    %v226 = vld [vmem:[#allocation8 + $0x60] sm:$0xff]
    %v227 = vld [vmem:[#allocation8 + $0x68] sm:$0xff]
    %v228 = vld [vmem:[#allocation8 + $0x70] sm:$0xff]
    %v229 = vld [vmem:[#allocation8 + $0x78] sm:$0xff]
    %v230 = vld [vmem:[#allocation8 + $0x80] sm:$0xff]
    %v231 = vld [vmem:[#allocation8 + $0x88] sm:$0xff]
    %v232 = vld [vmem:[#allocation8 + $0x90] sm:$0xff]
    %v233 = vld [vmem:[#allocation8 + $0x98] sm:$0xff]
    %v234 = vld [vmem:[#allocation8 + $0xa0] sm:$0xff]
    %v235 = vld [vmem:[#allocation8 + $0xa8] sm:$0xff]
    %v236 = vld [vmem:[#allocation8 + $0xb0] sm:$0xff]
    %v237 = vld [vmem:[#allocation8 + $0xb8] sm:$0xff]
    %v238 = vld [vmem:[#allocation8 + $0xc0] sm:$0xff]
    %v239 = vld [vmem:[#allocation8 + $0xc8] sm:$0xff]
    %v240 = vld [vmem:[#allocation8 + $0xd0] sm:$0xff]
    %v241 = vld [vmem:[#allocation8 + $0xd8] sm:$0xff]
    %v242 = vld [vmem:[#allocation8 + $0xe0] sm:$0xff]
    %v243 = vld [vmem:[#allocation8 + $0xe8] sm:$0xff]
    %v244 = vld [vmem:[#allocation8 + $0xf0] sm:$0xff]
    %v245 = vld [vmem:[#allocation8 + $0xf8] sm:$0xff]
    %v246 = vld [vmem:[#allocation8 + $0x100] sm:$0xff]
    %v247 = vld [vmem:[#allocation8 + $0x108] sm:$0xff]
    %v248 = vld [vmem:[#allocation8 + $0x110] sm:$0xff]
    %v249 = vld [vmem:[#allocation8 + $0x118] sm:$0xff]
    %v250 = vld [vmem:[#allocation8 + $0x120] sm:$0xff]
    %v251 = vld [vmem:[#allocation8 + $0x128] sm:$0xff]
    %v252 = vld [vmem:[#allocation8 + $0x130] sm:$0xff]
    %v253 = vld [vmem:[#allocation8 + $0x138] sm:$0xff]
    %v254 = vld [vmem:[#allocation8 + $0x140] sm:$0xff]
    %v255 = vld [vmem:[#allocation8 + $0x148] sm:$0xff]
    %v256 = vld [vmem:[#allocation8 + $0x150] sm:$0xff]
    %v257 = vld [vmem:[#allocation8 + $0x158] sm:$0xff]
    %v258 = vld [vmem:[#allocation8 + $0x160] sm:$0xff]
    %v259 = vld [vmem:[#allocation8 + $0x168] sm:$0xff]
    %v260 = vld [vmem:[#allocation8 + $0x170] sm:$0xff]
    %v261 = vld [vmem:[#allocation8 + $0x178] sm:$0xff]
    %v262 = vld [vmem:[#allocation10] sm:$0x7]
    %v264 = vperm.slane %v262, 0
    %v265 = vperm.slane %v262, 1
    %v266 = vperm.slane %v262, 2
    %270 = vmatpush.msra.mxu0 %v259
    %271 = vmatpush.msra.mxu0 %v256
    %272 = vmatpush.msra.mxu0 %v253
    %273 = vmatpush.msra.mxu0 %v250
    %274 = vmatpush.msra.mxu0 %v247
    %275 = vmatpush.msra.mxu0 %v244
    %276 = vmatpush.msra.mxu0 %v241
    %277 = vmatpush.msra.mxu0 %v238
    %278 = vmatpush.msra.mxu0 %v235
    %279 = vmatpush.msra.mxu0 %v232
    %280 = vmatpush.msra.mxu0 %v229
    %281 = vmatpush.msra.mxu0 %v226
    %282 = vmatpush.msra.mxu0 %v223
    %283 = vmatpush.msra.mxu0 %v220
    %284 = vmatpush.msra.mxu0 %v217
    %285 = vmatpush.msra.mxu0 %v214
    %286 = vmatmul.f32.gmra.mxu0 %v97
    %v287 = vpop.f32.mrf.mxu0
    %v288 = vadd.f32 %v264, %v287
    %289 = vdwg.mxu0
    %290 = vmatpush.msra.mxu0 %v260
    %291 = vmatpush.msra.mxu0 %v257
    %292 = vmatpush.msra.mxu0 %v254
    %293 = vmatpush.msra.mxu0 %v251
    %294 = vmatpush.msra.mxu0 %v248
    %295 = vmatpush.msra.mxu0 %v245
    %296 = vmatpush.msra.mxu0 %v242
    %297 = vmatpush.msra.mxu0 %v239
    %298 = vmatpush.msra.mxu0 %v236
    %299 = vmatpush.msra.mxu0 %v233
    %300 = vmatpush.msra.mxu0 %v230
    %301 = vmatpush.msra.mxu0 %v227
    %302 = vmatpush.msra.mxu0 %v224
    %303 = vmatpush.msra.mxu0 %v221
    %304 = vmatpush.msra.mxu0 %v218
    %305 = vmatpush.msra.mxu0 %v215
    %306 = vmatmul.f32.gmra.mxu0 %v97
    %v307 = vpop.f32.mrf.mxu0
    %v308 = vadd.f32 %v265, %v307
    %309 = vdwg.mxu0
    %310 = vmatpush.msra.mxu0 %v261
    %311 = vmatpush.msra.mxu0 %v258
    %312 = vmatpush.msra.mxu0 %v255
    %313 = vmatpush.msra.mxu0 %v252
    %314 = vmatpush.msra.mxu0 %v249
    %315 = vmatpush.msra.mxu0 %v246
    %316 = vmatpush.msra.mxu0 %v243
    %317 = vmatpush.msra.mxu0 %v240
    %318 = vmatpush.msra.mxu0 %v237
    %319 = vmatpush.msra.mxu0 %v234
    %320 = vmatpush.msra.mxu0 %v231
    %321 = vmatpush.msra.mxu0 %v228
    %322 = vmatpush.msra.mxu0 %v225
    %323 = vmatpush.msra.mxu0 %v222
    %324 = vmatpush.msra.mxu0 %v219
    %325 = vmatpush.msra.mxu0 %v216
    %326 = vmatmul.f32.gmra.mxu0 %v97
    %v327 = vpop.f32.mrf.mxu0
    %v328 = vadd.f32 %v266, %v327
    %329 = vdwg.mxu0
    %v330 = vadd.f32 %v172, %v288
    %v331 = vxor.u32 %v330, 2147483648
    %v332 = vmul.f32 %v331, 1.442695
    %v333 = vpow.pop %v332
    %v334 = vadd.f32 %v333, 1.0
    %v335 = vrcp.pop %v334
    %v336 = vmul.f32 %v334, %v335
    %v337 = vsub.f32 1.0, %v336
    %v338 = vmul.f32 %v335, %v337
    %v339 = vadd.f32 %v335, %v338
    %vm340 = vweird.f32 %v334
    %vm341 = vweird.f32 %v335
    %vm342 = vmor %vm340, %vm341
    %v343 = vsel %vm342, %v335, %v339
    %v344 = vand.u32 2147483647, %v334
    %vm345 = vcmp.eq.f32.partialorder %v344, 8.507059e+37
    %v346 = vand.u32 %v334, 2147483648
    %v347 = vor.u32 1.1754944e-38, %v346
    %v348 = vsel %vm345, %v347, %v343
    %v349 = vmul.f32 1.0, %v348
    %v350 = vadd.f32 %v192, %v308
    %v351 = vxor.u32 %v350, 2147483648
    %v352 = vmul.f32 %v351, 1.442695
    %v353 = vpow.pop %v352
    %v354 = vadd.f32 %v353, 1.0
    %v355 = vrcp.pop %v354
    %v356 = vmul.f32 %v354, %v355
    %v357 = vsub.f32 1.0, %v356
    %v358 = vmul.f32 %v355, %v357
    %v359 = vadd.f32 %v355, %v358
    %vm360 = vweird.f32 %v354
    %vm361 = vweird.f32 %v355
    %vm362 = vmor %vm360, %vm361
    %v363 = vsel %vm362, %v355, %v359
    %v364 = vand.u32 2147483647, %v354
    %vm365 = vcmp.eq.f32.partialorder %v364, 8.507059e+37
    %v366 = vand.u32 %v354, 2147483648
    %v367 = vor.u32 1.1754944e-38, %v366
    %v368 = vsel %vm365, %v367, %v363
    %v369 = vmul.f32 1.0, %v368
    %v370 = vmul.f32 %v349, %v328
    %v371 = vadd.f32 %v212, %v370
    %v372 = vtanh.pop %v371
    %v373 = vsub.f32 %v97, %v372
    %v374 = vmul.f32 %v369, %v373
    %v375 = vadd.f32 %v372, %v374
    %376 = vst [vmem:[#allocation11] sm:$0xff] %v375
    // Predicated region
    $region46: #{tpu_custom_call.1} parent=1 // pred_check
      _
    $region47: #{tpu_custom_call.1} parent=1 // pred_check_branch
      %378 = sbr.rel (0) target = $region49
    $region48: #{tpu_custom_call.1} parent=1 // pred_region
      %380 = vsyncadd [#allocation4], 0
      %s382 = sshll.u32 [#allocation11], 4
      %s383 = int_to_ptr.vmem [resolvable:$true] %s382
      %s384 = sshll.u32 %s6, 4
      %s385 = int_to_ptr.hbm [resolvable:$true] %s384
      %387 = dma.vmem_to_hbm [thread:$0]  %s383, 128, %s385, [#allocation4]
    $region49: #{tpu_custom_call.1} parent=1 // pred_fallthru
      _
    // Predicated region
    $region50: #{tpu_custom_call.1} parent=1 // pred_check
      _
    $region51: #{tpu_custom_call.1} parent=1 // pred_check_branch
      %389 = sbr.rel (0) target = $region53
    $region52: #{tpu_custom_call.1} parent=1 // pred_region
      %391 = dma.done [#allocation4], 128
    $region53: #{tpu_custom_call.1} parent=1 // pred_fallthru
      _
    %392 = vsyncpa [#allocation3], 1
    %393 = vsyncpa [#allocation6], 1
    %394 = vsyncpa [#allocation9], 1
    %395 = vsyncpa [#allocation4], 1

</llo_original>
